<compile_context>
chip_gen: v5e
topology: v5e:2x2
jax: 0.10.0
libtpu: 0.0.40
codegen_flags: <defaults>
</compile_context>

<pallas_src>
import functools

import jax
import jax.numpy as jnp
from jax import lax
from jax.experimental import pallas as pl
from jax.experimental.pallas import tpu as pltpu


def _round_up(x, m):
    return ((x + m - 1) // m) * m


def _contrastive_kernel(xc_ref, xr_ref, lc_ref, lr_ref, o_ref, *,
                        batch_size, pos_margin, neg_margin,
                        n_actual, mask_cols):
    # xc_ref: (tm, D)  anchor embedding tile
    # xr_ref: (tn, D)  gallery embedding tile
    # lc_ref: (tm, 1)  anchor labels (int32)
    # lr_ref: (1, tn)  gallery labels (int32)
    # o_ref : (tm, 1)  per-anchor-row partial sums (resident across N tiles)
    i = pl.program_id(0)          # M-tile index (parallel)
    n = pl.program_id(1)          # N-tile index (arbitrary / reduction)
    tm = xc_ref.shape[0]
    tn = xr_ref.shape[0]

    @pl.when(n == 0)
    def _():
        o_ref[...] = jnp.zeros_like(o_ref)

    # sim = xc @ xr.T without an explicit transpose: contract dim 1 of both.
    sim = lax.dot_general(
        xc_ref[...], xr_ref[...],
        dimension_numbers=(((1,), (1,)), ((), ())),
        preferred_element_type=jnp.float32)

    lc = lc_ref[...]              # (tm, 1)
    lr = lr_ref[...]              # (1, tn)
    eq = lc == lr                 # (tm, tn) broadcast compare

    # Per-axis global indices (small vectors, not (tm, tn) tensors).
    rpos = i * tm + lax.broadcasted_iota(jnp.int32, (tm, 1), 0)
    cpos = n * tn + lax.broadcasted_iota(jnp.int32, (1, tn), 1)
    # ~eye(bs).repeat(...)  <=>  (row % bs) == (col % bs); mods stay on the
    # tm-vector / tn-vector, the (tm, tn) work is one broadcast compare.
    diag = (rpos % batch_size) == (cpos % batch_size)

    # Fused masked hinges:
    #   same label & off-diagonal : relu(pos_margin - sim)
    #   different label           : relu(sim - neg_margin)
    pos_term = jnp.maximum(pos_margin - sim, 0.0)
    neg_term = jnp.maximum(sim - neg_margin, 0.0)
    contrib = jnp.where(eq, jnp.where(diag, 0.0, pos_term), neg_term)

    # Columns that only exist because of tile padding contribute nothing.
    # (Static flag; no code emitted when N divides the tile size.)
    if mask_cols:
        contrib = jnp.where(cpos < n_actual, contrib, 0.0)

    # Per-anchor-row partial sum, accumulated across N tiles.
    o_ref[...] += jnp.sum(contrib, axis=1, keepdims=True)


def contrastive_loss(inputs, targets, *, margin=0.5, batch_size=128,
                     pos_margin=0.8, neg_margin=0.5, all_anchor=False,
                     tile_m=256, tile_n=512):
    """Mirrors ContrastiveLoss.forward.

    `margin` is accepted but unused — exactly like the PyTorch module
    (only pos_margin / neg_margin enter the loss).
    """
    del margin

    inputs_row, targets_row = inputs, targets
    if batch_size == inputs.shape[0] or all_anchor:
        inputs_col, targets_col = inputs, targets
    else:
        inputs_col, targets_col = inputs[:batch_size], targets[:batch_size]

    M, D = inputs_col.shape
    N = inputs_row.shape[0]

    # Tile sizes: rows multiple of 8 (sublane), cols multiple of 128 (lane).
    tm = _round_up(min(tile_m, _round_up(M, 8)), 8)
    tn = _round_up(min(tile_n, _round_up(N, 128)), 128)
    M_pad = _round_up(M, tm)
    N_pad = _round_up(N, tn)

    xc, xr = inputs_col, inputs_row
    if M_pad > M:
        xc = jnp.pad(xc, ((0, M_pad - M), (0, 0)))
    if N_pad > N:
        xr = jnp.pad(xr, ((0, N_pad - N), (0, 0)))

    lc = targets_col.astype(jnp.int32)
    lr = targets_row.astype(jnp.int32)
    if M_pad > M:
        lc = jnp.pad(lc, (0, M_pad - M), constant_values=-1)
    if N_pad > N:
        lr = jnp.pad(lr, (0, N_pad - N), constant_values=-1)
    lc = lc.reshape(M_pad, 1)
    lr = lr.reshape(1, N_pad)

    kernel = functools.partial(
        _contrastive_kernel,
        batch_size=int(batch_size),
        pos_margin=float(pos_margin),
        neg_margin=float(neg_margin),
        n_actual=int(N),
        mask_cols=N_pad > N,
    )

    grid = (M_pad // tm, N_pad // tn)
    # TODO(synk): for very large embedding dims, add an inner K grid axis over D
    # with a (tm, tn) f32 VMEM accumulator instead of loading full (tile, D) rows.
    row_sums = pl.pallas_call(
        kernel,
        out_shape=jax.ShapeDtypeStruct((M_pad, 1), jnp.float32),
        grid=grid,
        in_specs=[
            pl.BlockSpec((tm, D), lambda i, n: (i, 0)),   # anchor embeddings
            pl.BlockSpec((tn, D), lambda i, n: (n, 0)),   # gallery embeddings
            pl.BlockSpec((tm, 1), lambda i, n: (i, 0)),   # anchor labels
            pl.BlockSpec((1, tn), lambda i, n: (0, n)),   # gallery labels
        ],
        out_specs=pl.BlockSpec((tm, 1), lambda i, n: (i, 0)),
        compiler_params=pltpu.CompilerParams(
            dimension_semantics=("parallel", "arbitrary"),
            vmem_limit_bytes=32 * 1024 * 1024),
    )(xc, xr, lc, lr)

    # Rows added only for tile padding are simply sliced away here (no
    # per-element row masking needed inside the kernel).
    return jnp.sum(row_sums[:M]) / batch_size


def contrastive_loss_ref(inputs, targets, *, batch_size, pos_margin=0.8,
                         neg_margin=0.5, all_anchor=False):
    """Pure-JAX reference (same math as the PyTorch module)."""
    inputs_row, targets_row = inputs, targets
    if batch_size == inputs.shape[0] or all_anchor:
        inputs_col, targets_col = inputs, targets
    else:
        inputs_col, targets_col = inputs[:batch_size], targets[:batch_size]
    sim = inputs_col @ inputs_row.T
    M, N = sim.shape
    eq = targets_col[:, None] == targets_row[None, :]
    ri = jnp.arange(M)[:, None] % batch_size
    ci = jnp.arange(N)[None, :] % batch_size
    pos_mask = eq & ~(ri == ci)
    neg_mask = ~eq
    pos_sel = pos_mask & (sim < pos_margin)
    neg_sel = neg_mask & (sim > neg_margin)
    loss = (jnp.sum(jnp.where(pos_sel, pos_margin - sim, 0.0))
            + jnp.sum(jnp.where(neg_sel, sim - neg_margin, 0.0)))
    return loss / batch_size


if __name__ == "__main__":
    key = jax.random.PRNGKey(0)
    k1, k2, k3, k4 = jax.random.split(key, 4)

    # Test 1: small shapes, single-tile grid (anchor batch 8 of 16, dim 32).
    total_batch, batch_size, dim, n_classes = 16, 8, 32, 4
    emb = jax.random.normal(k1, (total_batch, dim), dtype=jnp.float32)
    emb = emb / jnp.linalg.norm(emb, axis=-1, keepdims=True)
    labels = jax.random.randint(k2, (total_batch,), 0, n_classes, dtype=jnp.int32)

    loss = contrastive_loss(emb, labels, batch_size=batch_size,
                            pos_margin=0.8, neg_margin=0.5, all_anchor=False)
    loss = jax.block_until_ready(loss)
    ref = contrastive_loss_ref(emb, labels, batch_size=batch_size,
                               pos_margin=0.8, neg_margin=0.5, all_anchor=False)
    assert jnp.allclose(loss, ref, rtol=1e-4, atol=1e-3), (loss, ref)

    # Test 2: multi-tile grid with row AND col padding (2x2 grid).
    total_batch2, batch_size2, dim2, n_classes2 = 192, 64, 48, 6
    emb2 = jax.random.normal(k3, (total_batch2, dim2), dtype=jnp.float32)
    emb2 = emb2 / jnp.linalg.norm(emb2, axis=-1, keepdims=True)
    labels2 = jax.random.randint(k4, (total_batch2,), 0, n_classes2, dtype=jnp.int32)

    loss2 = contrastive_loss(emb2, labels2, batch_size=batch_size2,
                             tile_m=48, tile_n=128)
    loss2 = jax.block_until_ready(loss2)
    ref2 = contrastive_loss_ref(emb2, labels2, batch_size=batch_size2)
    assert jnp.allclose(loss2, ref2, rtol=1e-4, atol=1e-3), (loss2, ref2)

    # Test 3: all_anchor=True path (square M == N grid, no slicing).
    loss3 = contrastive_loss(emb2, labels2, batch_size=batch_size2,
                             all_anchor=True, tile_m=64, tile_n=128)
    loss3 = jax.block_until_ready(loss3)
    ref3 = contrastive_loss_ref(emb2, labels2, batch_size=batch_size2,
                                all_anchor=True)
    assert jnp.allclose(loss3, ref3, rtol=1e-4, atol=1e-3), (loss3, ref3)

    print("KERNEL_OK")
</pallas_src>

<mosaic_0001>
module attributes {stable_mosaic.version = 11 : i64} {
  func.func @_contrastive_kernel(%arg0: i32, %arg1: i32, %arg2: memref<8x32xf32, #tpu.memory_space<vmem>>, %arg3: memref<128x32xf32, #tpu.memory_space<vmem>>, %arg4: memref<8x1xi32, #tpu.memory_space<vmem>>, %arg5: memref<1x128xi32, #tpu.memory_space<vmem>>, %arg6: memref<8x1xf32, #tpu.memory_space<vmem>>) attributes {dimension_semantics = [#tpu.dimension_semantics<parallel>, #tpu.dimension_semantics<arbitrary>], iteration_bounds = array<i64: 1, 1>, scalar_prefetch = 0 : i64, scratch_operands = 0 : i64, tpu.core_type = #tpu.core_type<tc>, window_params = [{transform_indices = @transform_0, window_bounds = array<i64: 8, 32>}, {transform_indices = @transform_1, window_bounds = array<i64: 128, 32>}, {transform_indices = @transform_2, window_bounds = array<i64: 8, 1>}, {transform_indices = @transform_3, window_bounds = array<i64: 1, 128>}, {transform_indices = @transform_4, window_bounds = array<i64: 8, 1>}]} {
    %c0_i32 = arith.constant 0 : i32
    %0 = arith.cmpi eq, %arg1, %c0_i32 : i32
    %1 = arith.extui %0 : i1 to i32
    %c0_i32_0 = arith.constant 0 : i32
    %2 = arith.cmpi ne, %1, %c0_i32_0 : i32
    scf.if %2 {
      %cst_30 = arith.constant 0.000000e+00 : f32
      %76 = vector.broadcast %cst_30 : f32 to vector<8x1xf32>
      %c0_31 = arith.constant 0 : index
      %c0_32 = arith.constant 0 : index
      %77 = vector.load %arg6[%c0_31, %c0_32] : memref<8x1xf32, #tpu.memory_space<vmem>>, vector<8x1xf32>
      tpu.vector_store %arg6[%c0_31, %c0_32], %76 {strides = array<i32>} : memref<8x1xf32, #tpu.memory_space<vmem>>, vector<8x1xf32>,
    } else {
    }
    %c0 = arith.constant 0 : index
    %c0_1 = arith.constant 0 : index
    %3 = vector.load %arg2[%c0, %c0_1] : memref<8x32xf32, #tpu.memory_space<vmem>>, vector<8x32xf32>
    %c0_2 = arith.constant 0 : index
    %c0_3 = arith.constant 0 : index
    %4 = vector.load %arg3[%c0_2, %c0_3] : memref<128x32xf32, #tpu.memory_space<vmem>>, vector<128x32xf32>
    %cst = arith.constant dense<0.000000e+00> : vector<8x128xf32>
    %5 = tpu.matmul %3, %4, %cst {dimension_numbers = #tpu.dot_dimension_numbers<[1], [1], [0], [0], [0, 0, 1, 0], [], []>} : vector<8x32xf32>, vector<128x32xf32>, vector<8x128xf32> -> vector<8x128xf32>
    %c0_4 = arith.constant 0 : index
    %c0_5 = arith.constant 0 : index
    %6 = vector.load %arg4[%c0_4, %c0_5] : memref<8x1xi32, #tpu.memory_space<vmem>>, vector<8x1xi32>
    %c0_6 = arith.constant 0 : index
    %c0_7 = arith.constant 0 : index
    %7 = vector.load %arg5[%c0_6, %c0_7] : memref<1x128xi32, #tpu.memory_space<vmem>>, vector<1x128xi32>
    %8 = vector.broadcast %6 : vector<8x1xi32> to vector<8x128xi32>
    %9 = vector.broadcast %7 : vector<1x128xi32> to vector<8x128xi32>
    %10 = arith.cmpi eq, %8, %9 : vector<8x128xi32>
    %c8_i32 = arith.constant 8 : i32
    %11 = arith.muli %arg0, %c8_i32 : i32
    %12 = tpu.iota {dimensions = array<i32: 0>} : vector<8x1xi32>
    %13 = vector.broadcast %11 : i32 to vector<8x1xi32>
    %14 = arith.addi %13, %12 : vector<8x1xi32>
    %c128_i32 = arith.constant 128 : i32
    %15 = arith.muli %arg1, %c128_i32 : i32
    %16 = tpu.iota {dimensions = array<i32: 1>} : vector<1x128xi32>
    %17 = vector.broadcast %15 : i32 to vector<1x128xi32>
    %18 = arith.addi %17, %16 : vector<1x128xi32>
    %c8_i32_8 = arith.constant 8 : i32
    %c0_i32_9 = arith.constant 0 : i32
    %19 = arith.cmpi eq, %c8_i32_8, %c0_i32_9 : i32
    %c1_i32 = arith.constant 1 : i32
    %20 = arith.select %19, %c1_i32, %c8_i32_8 : i32
    %21 = vector.broadcast %20 : i32 to vector<8x1xi32>
    %22 = arith.remsi %14, %21 : vector<8x1xi32>
    %c0_i32_10 = arith.constant 0 : i32
    %23 = vector.broadcast %c0_i32_10 : i32 to vector<8x1xi32>
    %24 = arith.cmpi ne, %22, %23 : vector<8x1xi32>
    %c0_i32_11 = arith.constant 0 : i32
    %25 = vector.broadcast %c0_i32_11 : i32 to vector<8x1xi32>
    %26 = arith.cmpi slt, %22, %25 : vector<8x1xi32>
    %c0_i32_12 = arith.constant 0 : i32
    %27 = arith.cmpi slt, %20, %c0_i32_12 : i32
    %28 = vector.broadcast %27 : i1 to vector<8x1xi1>
    %29 = vector.broadcast %28 : vector<8x1xi1> to vector<8x1xi1>
    %30 = arith.xori %26, %29 : vector<8x1xi1>
    %31 = arith.andi %30, %24 : vector<8x1xi1>
    %32 = vector.broadcast %20 : i32 to vector<8x1xi32>
    %33 = arith.addi %22, %32 : vector<8x1xi32>
    %34 = arith.select %31, %33, %22 : vector<8x1xi1>, vector<8x1xi32>
    %c8_i32_13 = arith.constant 8 : i32
    %c0_i32_14 = arith.constant 0 : i32
    %35 = arith.cmpi eq, %c8_i32_13, %c0_i32_14 : i32
    %c1_i32_15 = arith.constant 1 : i32
    %36 = arith.select %35, %c1_i32_15, %c8_i32_13 : i32
    %37 = vector.broadcast %36 : i32 to vector<1x128xi32>
    %38 = arith.remsi %18, %37 : vector<1x128xi32>
    %c0_i32_16 = arith.constant 0 : i32
    %39 = vector.broadcast %c0_i32_16 : i32 to vector<1x128xi32>
    %40 = arith.cmpi ne, %38, %39 : vector<1x128xi32>
    %c0_i32_17 = arith.constant 0 : i32
    %41 = vector.broadcast %c0_i32_17 : i32 to vector<1x128xi32>
    %42 = arith.cmpi slt, %38, %41 : vector<1x128xi32>
    %c0_i32_18 = arith.constant 0 : i32
    %43 = arith.cmpi slt, %36, %c0_i32_18 : i32
    %44 = vector.broadcast %43 : i1 to vector<1x128xi1>
    %45 = vector.broadcast %44 : vector<1x128xi1> to vector<1x128xi1>
    %46 = arith.xori %42, %45 : vector<1x128xi1>
    %47 = arith.andi %46, %40 : vector<1x128xi1>
    %48 = vector.broadcast %36 : i32 to vector<1x128xi32>
    %49 = arith.addi %38, %48 : vector<1x128xi32>
    %50 = arith.select %47, %49, %38 : vector<1x128xi1>, vector<1x128xi32>
    %51 = vector.broadcast %34 : vector<8x1xi32> to vector<8x128xi32>
    %52 = vector.broadcast %50 : vector<1x128xi32> to vector<8x128xi32>
    %53 = arith.cmpi eq, %51, %52 : vector<8x128xi32>
    %cst_19 = arith.constant 8.000000e-01 : f32
    %54 = vector.broadcast %cst_19 : f32 to vector<8x128xf32>
    %55 = arith.subf %54, %5 : vector<8x128xf32>
    %cst_20 = arith.constant 0.000000e+00 : f32
    %56 = vector.broadcast %cst_20 : f32 to vector<8x128xf32>
    %57 = arith.maximumf %55, %56 : vector<8x128xf32>
    %cst_21 = arith.constant 5.000000e-01 : f32
    %58 = vector.broadcast %cst_21 : f32 to vector<8x128xf32>
    %59 = arith.subf %5, %58 : vector<8x128xf32>
    %cst_22 = arith.constant 0.000000e+00 : f32
    %60 = vector.broadcast %cst_22 : f32 to vector<8x128xf32>
    %61 = arith.maximumf %59, %60 : vector<8x128xf32>
    %cst_23 = arith.constant 0.000000e+00 : f32
    %62 = vector.broadcast %cst_23 : f32 to vector<8x128xf32>
    %63 = arith.select %53, %62, %57 : vector<8x128xi1>, vector<8x128xf32>
    %64 = arith.select %10, %63, %61 : vector<8x128xi1>, vector<8x128xf32>
    %c16_i32 = arith.constant 16 : i32
    %65 = vector.broadcast %c16_i32 : i32 to vector<1x128xi32>
    %66 = arith.cmpi slt, %18, %65 : vector<1x128xi32>
    %cst_24 = arith.constant 0.000000e+00 : f32
    %67 = vector.shape_cast %66 : vector<1x128xi1> to vector<1x128xi1>
    %68 = vector.broadcast %67 : vector<1x128xi1> to vector<8x128xi1>
    %69 = vector.broadcast %cst_24 : f32 to vector<8x128xf32>
    %70 = arith.select %68, %64, %69 : vector<8x128xi1>, vector<8x128xf32>
    %c0_25 = arith.constant 0 : index
    %c0_26 = arith.constant 0 : index
    %71 = vector.load %arg6[%c0_25, %c0_26] : memref<8x1xf32, #tpu.memory_space<vmem>>, vector<8x1xf32>
    %cst_27 = arith.constant dense<0.000000e+00> : vector<8xf32>
    %72 = vector.multi_reduction <add>, %70, %cst_27 [1] : vector<8x128xf32> to vector<8xf32>
    %73 = vector.shape_cast %72 : vector<8xf32> to vector<8x1xf32>
    %74 = arith.addf %71, %73 : vector<8x1xf32>
    %c0_28 = arith.constant 0 : index
    %c0_29 = arith.constant 0 : index
    %75 = vector.load %arg6[%c0_28, %c0_29] : memref<8x1xf32, #tpu.memory_space<vmem>>, vector<8x1xf32>
    tpu.vector_store %arg6[%c0_28, %c0_29], %74 {strides = array<i32>} : memref<8x1xf32, #tpu.memory_space<vmem>>, vector<8x1xf32>,
    return
  }
  func.func @transform_0(%arg0: i32, %arg1: i32) -> (i32, i32) {
    %c0_i32 = arith.constant 0 : i32
    %c0_i32_0 = arith.constant 0 : i32
    return %arg0, %c0_i32 : i32, i32
  }
  func.func @transform_1(%arg0: i32, %arg1: i32) -> (i32, i32) {
    %c0_i32 = arith.constant 0 : i32
    %c0_i32_0 = arith.constant 0 : i32
    return %arg1, %c0_i32 : i32, i32
  }
  func.func @transform_2(%arg0: i32, %arg1: i32) -> (i32, i32) {
    %c0_i32 = arith.constant 0 : i32
    %c0_i32_0 = arith.constant 0 : i32
    return %arg0, %c0_i32 : i32, i32
  }
  func.func @transform_3(%arg0: i32, %arg1: i32) -> (i32, i32) {
    %c0_i32 = arith.constant 0 : i32
    %c0_i32_0 = arith.constant 0 : i32
    return %c0_i32, %arg1 : i32, i32
  }
  func.func @transform_4(%arg0: i32, %arg1: i32) -> (i32, i32) {
    %c0_i32 = arith.constant 0 : i32
    %c0_i32_0 = arith.constant 0 : i32
    return %arg0, %c0_i32 : i32, i32
  }
}

</mosaic_0001>

<llo_original>
// kernel: tpu_custom_call.1
$region0: #{tpu_custom_call.1}
  #allocation0 [shape = 'u32[]', space=smem, size = 0x4, offset = 0x4, fixed_abs, tag = 'smem constant byte address 0x4 - core index']
  #allocation1 [shape = 'u32[72,128]{1,0:T(1,128)}', space=vmem, size = 0x9000, scoped, tag = 'internal scratch']
  %s0 = inlined_call_operand.vmem [shape: f32[8,32], index: 0, kind: input, shape index: {}]
  %s1 = inlined_call_operand.vmem [shape: f32[128,32], index: 1, kind: input, shape index: {}]
  %s2 = inlined_call_operand.vmem [shape: s32[8,1], index: 2, kind: input, shape index: {}]
  %s3 = inlined_call_operand.vmem [shape: s32[1,128], index: 3, kind: input, shape index: {}]
  %s4 = inlined_call_operand.vmem [shape: f32[8,1], index: 4, kind: output, shape index: {}]
  %s5 = sld [smem:[#allocation0]]
  $region30: #{tpu_custom_call.1} parent=0
    _
  %s7 = ssub.s32 1, %s5
  %s8 = scalar_select 0, %s7, %s5
  // Predicated region
  $region2: #{tpu_custom_call.1} parent=0 // pred_check
    _
  $region3: #{tpu_custom_call.1} parent=0 // pred_check_branch
    %10 = sbr.rel (0) target = $region5
  $region4: #{tpu_custom_call.1} parent=0 // pred_region
    _
  $region5: #{tpu_custom_call.1} parent=0 // pred_fallthru
    _
  // Predicated region
  $region6: #{tpu_custom_call.1} parent=0 // pred_check
    _
  $region7: #{tpu_custom_call.1} parent=0 // pred_check_branch
    %12 = sbr.rel (0) target = $region9
  $region8: #{tpu_custom_call.1} parent=0 // pred_region
    _
  $region9: #{tpu_custom_call.1} parent=0 // pred_fallthru
    _
  // Predicated region
  $region10: #{tpu_custom_call.1} parent=0 // pred_check
    _
  $region11: #{tpu_custom_call.1} parent=0 // pred_check_branch
    %14 = sbr.rel (0) target = $region13
  $region12: #{tpu_custom_call.1} parent=0 // pred_region
    _
  $region13: #{tpu_custom_call.1} parent=0 // pred_fallthru
    _
  // Predicated region
  $region14: #{tpu_custom_call.1} parent=0 // pred_check
    _
  $region15: #{tpu_custom_call.1} parent=0 // pred_check_branch
    %16 = sbr.rel (0) target = $region17
  $region16: #{tpu_custom_call.1} parent=0 // pred_region
    _
  $region17: #{tpu_custom_call.1} parent=0 // pred_fallthru
    _
  %p17 = scmp.eq.s32.totalorder 0, 0
  // Predicated region
  $region18: #{tpu_custom_call.1} parent=0 // pred_check
    %p18 = pneg %p17
  $region19: #{tpu_custom_call.1} parent=0 // pred_check_branch
    %20 = sbr.rel (%p18) target = $region21
  $region20: #{tpu_custom_call.1} parent=0 // pred_region
    %vm21 = vcmask 7168
    %22 = vst.msk [vmem:[%s4] sm:$0xff] %vm21, 0.0
  $region21: #{tpu_custom_call.1} parent=0 // pred_fallthru
    _
  %v23 = vld [vmem:[%s0] sm:$0xff]
  %v24 = vld [vmem:[%s1] sm:$0xff]
  %v25 = vld [vmem:[%s1 + $0x8] sm:$0xff]
  %v26 = vld [vmem:[%s1 + $0x10] sm:$0xff]
  %v27 = vld [vmem:[%s1 + $0x18] sm:$0xff]
  %v28 = vld [vmem:[%s1 + $0x20] sm:$0xff]
  %v29 = vld [vmem:[%s1 + $0x28] sm:$0xff]
  %v30 = vld [vmem:[%s1 + $0x30] sm:$0xff]
  %v31 = vld [vmem:[%s1 + $0x38] sm:$0xff]
  %v32 = vld [vmem:[%s1 + $0x40] sm:$0xff]
  %v33 = vld [vmem:[%s1 + $0x48] sm:$0xff]
  %v34 = vld [vmem:[%s1 + $0x50] sm:$0xff]
  %v35 = vld [vmem:[%s1 + $0x58] sm:$0xff]
  %v36 = vld [vmem:[%s1 + $0x60] sm:$0xff]
  %v37 = vld [vmem:[%s1 + $0x68] sm:$0xff]
  %v38 = vld [vmem:[%s1 + $0x70] sm:$0xff]
  %v39 = vld [vmem:[%s1 + $0x78] sm:$0xff]
  %vm40 = vcmask 261120
  %v42 = vsel %vm40, %v23, 0
  %v45 = vsel %vm40, %v24, 0
  %v48 = vsel %vm40, %v25, 0
  %v51 = vsel %vm40, %v26, 0
  %v54 = vsel %vm40, %v27, 0
  %v57 = vsel %vm40, %v28, 0
  %v60 = vsel %vm40, %v29, 0
  %v63 = vsel %vm40, %v30, 0
  %v66 = vsel %vm40, %v31, 0
  %v69 = vsel %vm40, %v32, 0
  %v72 = vsel %vm40, %v33, 0
  %v75 = vsel %vm40, %v34, 0
  %v78 = vsel %vm40, %v35, 0
  %v81 = vsel %vm40, %v36, 0
  %v84 = vsel %vm40, %v37, 0
  %v87 = vsel %vm40, %v38, 0
  %v90 = vsel %vm40, %v39, 0
  %92 = vmatpush.xpose.msra.mxu0 %v90
  %93 = vmatpush.xpose.msra.mxu0 %v87
  %94 = vmatpush.xpose.msra.mxu0 %v84
  %95 = vmatpush.xpose.msra.mxu0 %v81
  %96 = vmatpush.xpose.msra.mxu0 %v78
  %97 = vmatpush.xpose.msra.mxu0 %v75
  %98 = vmatpush.xpose.msra.mxu0 %v72
  %99 = vmatpush.xpose.msra.mxu0 %v69
  %100 = vmatpush.xpose.msra.mxu0 %v66
  %101 = vmatpush.xpose.msra.mxu0 %v63
  %102 = vmatpush.xpose.msra.mxu0 %v60
  %103 = vmatpush.xpose.msra.mxu0 %v57
  %104 = vmatpush.xpose.msra.mxu0 %v54
  %105 = vmatpush.xpose.msra.mxu0 %v51
  %106 = vmatpush.xpose.msra.mxu0 %v48
  %107 = vmatpush.xpose.msra.mxu0 %v45
  %108 = vmatmul.f32.gmra.mxu0 %v42
  %v109 = vpop.f32.mrf.mxu0
  %v110 = vadd.f32 0.0, %v109
  %111 = vdwg.mxu0
  %v112 = vld [vmem:[%s2] sm:$0xff]
  %v113 = vld [vmem:[%s3] sm:$0x1]
  %114 = vset.pattern.permute.xlu0 0
  %115 = vperm.xlu0 %114, %v112
  %v116 = vpop.permute.xlu0 %115
  %v117 = vperm.slane %v113, 0
  %vm118 = vcmp.eq.s32.totalorder %v116, %v117
  %s119 = smul.u32 0, 8
  %v120 = vlaneseq
  %v121 = vshrl.u32 %v120, 7
  %v122 = vstv %s119
  %v123 = vadd.s32 %v122, %v121
  %s124 = smul.u32 0, 128
  %v125 = vlaneseq
  %v126 = vand.u32 %v125, 127
  %v127 = vstv %s124
  %v128 = vadd.s32 %v127, %v126
  %vm129 = vcmp.lt.s32.totalorder %v123, 0
  %v130 = vsub.s32 0, %v123
  %v131 = vsel %vm129, %v130, %v123
  %v132 = vshrl.u32 %v131, 3
  %v133 = vand.u32 %v131, 7
  %v134 = vsub.s32 0, %v133
  %v135 = vsel %vm129, %v134, %v133
  %vm136 = vcmp.ne.s32.totalorder %v135, 0
  %vm137 = vcmp.lt.s32.totalorder %v135, 0
  %vm138 = vmand %vm137, %vm136
  %v139 = vadd.s32 %v135, 8
  %v140 = vsel %vm138, %v139, %v135
  %vm141 = vcmp.lt.s32.totalorder %v128, 0
  %v142 = vsub.s32 0, %v128
  %v143 = vsel %vm141, %v142, %v128
  %v144 = vshrl.u32 %v143, 3
  %v145 = vand.u32 %v143, 7
  %v146 = vsub.s32 0, %v145
  %v147 = vsel %vm141, %v146, %v145
  %vm148 = vcmp.ne.s32.totalorder %v147, 0
  %vm149 = vcmp.lt.s32.totalorder %v147, 0
  %vm150 = vmand %vm149, %vm148
  %v151 = vadd.s32 %v147, 8
  %v152 = vsel %vm150, %v151, %v147
  %vm153 = vcmp.eq.s32.totalorder %v140, %v152
  %v154 = vsub.f32 0.8, %v110
  %v155 = vmax.f32 %v154, 0.0
  %v156 = vsub.f32 %v110, 0.5
  %v157 = vmax.f32 %v156, 0.0
  %v158 = vsel %vm153, 0.0, %v155
  %v159 = vsel %vm118, %v158, %v157
  %vm160 = vcmp.lt.s32.totalorder %v128, 16
  %v161 = vsel %vm160, 1, 0
  %vm162 = vcmp.eq.s32.totalorder %v161, 1
  %v163 = vsel %vm162, %v159, 0.0
  %v164 = vld [vmem:[%s4] sm:$0xff]
  %165 = vadd.xlane.f32.xlu0 %v163
  %v166 = vpop.xlane.xlu0 %165
  %v167 = vadd.f32 %v164, %v166
  %vm168 = vcmask 7168
  %169 = vst.msk [vmem:[%s4] sm:$0xff] %vm168, %v167
  // Predicated region
  $region22: #{tpu_custom_call.1} parent=0 // pred_check
    _
  $region23: #{tpu_custom_call.1} parent=0 // pred_check_branch
    %171 = sbr.rel (0) target = $region25
  $region24: #{tpu_custom_call.1} parent=0 // pred_region
    _
  $region25: #{tpu_custom_call.1} parent=0 // pred_fallthru
    _
  // Predicated region
  $region26: #{tpu_custom_call.1} parent=0 // pred_check
    _
  $region27: #{tpu_custom_call.1} parent=0 // pred_check_branch
    %173 = sbr.rel (0) target = $region29
  $region28: #{tpu_custom_call.1} parent=0 // pred_region
    _
  $region29: #{tpu_custom_call.1} parent=0 // pred_fallthru
    _

</llo_original>
